<compile_context>
chip_gen: v5e
topology: v5e:2x2
jax: 0.10.0
libtpu: 0.0.40
codegen_flags: <defaults>
</compile_context>

<pallas_src>
import math

import jax
import jax.numpy as jnp
from jax.experimental import pallas as pl
from jax.experimental.pallas import tpu as pltpu

# Problem sizes (small, consistent with the module's forward).
S = 16          # state dim
A = 8           # action dim
H = 32          # hidden width of all MLPs
M = 3           # ensemble size (elites)
N = 100         # number of candidate actions (torch code uses n = 100)
NPAD = 128      # candidates padded to a full sublane/MXU-row tile
MH = M * H      # 96

LANES = H + MH  # 128: policy hidden | fused ensemble state-term, one lane-dense row
assert LANES == 128

# Row layout of the single packed weight slab [WSLAB_ROWS, 128].
ROW_W1CAT = 0                 # [S,   128] : [pw1 | tw1s_cat]
ROW_PW2 = S                   # [H,     A] : pw2
ROW_TW1A = ROW_PW2 + H        # [A,    MH] : tw1a_cat
ROW_W23 = ROW_TW1A + A        # [MH,   MH] : block-diag(tw2_m @ hw1)
ROW_HW2 = ROW_W23 + MH        # [MH,    M] : block-diag(hw2)
WSLAB_ROWS = ROW_HW2 + MH     # 248


def exploration_kernel(state_ref, noise_ref, w_ref, b_ref, out_ref):
    state = state_ref[...]                                     # [1, S]
    noise = noise_ref[...]                                     # [NPAD, A]

    # ---- packed weights / biases (static row & lane slices of the slabs) ----
    w1cat = w_ref[ROW_W1CAT:ROW_PW2, :]                        # [S, 128]
    pw2 = w_ref[ROW_PW2:ROW_TW1A, 0:A]                         # [H, A]
    tw1a = w_ref[ROW_TW1A:ROW_W23, 0:MH]                       # [A, MH]
    w23 = w_ref[ROW_W23:ROW_HW2, 0:MH]                         # [MH, MH]
    hw2 = w_ref[ROW_HW2:WSLAB_ROWS, 0:M]                       # [MH, M]

    b1cat = b_ref[0:1, :]                                      # [1, 128] = [pb1 | tb1_cat]
    pb2 = b_ref[1:2, 0:A]                                      # [1, A]
    b23 = b_ref[2:3, 0:MH]                                     # [1, MH]
    hb2 = b_ref[3:4, 0:M]                                      # [1, M]

    # ---- policy first layer + shared ensemble state-term: ONE [1,16]@[16,128] push ----
    row1 = jnp.dot(state, w1cat, preferred_element_type=jnp.float32) + b1cat   # [1, 128]
    ph = jnp.maximum(row1[:, :H], 0.0)                         # [1, H]   policy hidden
    sh = row1[:, H:]                                           # [1, MH]  state@tw1s + tb1 (shared)

    mean = jnp.dot(ph, pw2, preferred_element_type=jnp.float32) + pb2          # [1, A]

    # ---- decay = logspace(0, -3, N), computed in-kernel from the row iota ----
    rowf = jax.lax.broadcasted_iota(jnp.int32, (NPAD, 1), 0).astype(jnp.float32)
    decay = jnp.exp(jnp.float32(-3.0 * math.log(10.0) / (N - 1)) * rowf)       # [NPAD, 1]

    # ---- AddGaussianNoise: candidate actions = mean + randn * std ----
    actions = mean + noise * decay                             # [NPAD, A]

    # ---- fused ensemble + barrier:  u[i] = max_m h(model_m(s, a_i)) ----
    # h1 per-model block m: relu(a @ tw1a_m + s @ tw1s_m + tb1_m)
    h1 = jnp.maximum(
        jnp.dot(actions, tw1a, preferred_element_type=jnp.float32) + sh, 0.0)  # [NPAD, MH]
    # transition 2nd layer folded through the (linear) barrier 1st layer:
    #   z_m = relu((h1_m @ tw2_m + tb2_m) @ hw1 + hb1) = relu(h1_m @ (tw2_m@hw1) + b23_m)
    z = jnp.maximum(
        jnp.dot(h1, w23, preferred_element_type=jnp.float32) + b23, 0.0)       # [NPAD, MH]
    hv = jnp.dot(z, hw2, preferred_element_type=jnp.float32) + hb2             # [NPAD, M]
    u = jnp.max(hv, axis=-1, keepdims=True)                    # [NPAD, 1] max over models

    # ---- in-kernel safe-action selection (first index with u <= 0, else mean) ----
    valid = rowf < jnp.float32(N)                              # mask out padded rows
    safe = jnp.logical_and(u <= 0.0, valid)
    masked_idx = jnp.where(safe, rowf, jnp.float32(NPAD))
    first = jnp.min(masked_idx)                                # scalar: first safe row (or NPAD)
    has_safe = first < jnp.float32(N)
    onehot = rowf == first                                     # [NPAD, 1]
    selected = jnp.sum(jnp.where(onehot, actions, 0.0), axis=0, keepdims=True)  # [1, A]
    out_ref[...] = jnp.where(has_safe, selected, mean)         # [1, A]


def make_params(key):
    """Deterministic synthetic parameters (He-style scaled normals), unfused layout."""
    ks = jax.random.split(key, 12)
    f32 = jnp.float32

    def w(k, shape, fan_in):
        return jax.random.normal(k, shape, dtype=f32) / jnp.sqrt(f32(fan_in))

    return dict(
        # policy MLP  S -> H -> A
        pw1=w(ks[0], (S, H), S), pb1=jnp.zeros((1, H), f32),
        pw2=w(ks[1], (H, A), H), pb2=jnp.zeros((1, A), f32),
        # ensemble transition models  (S + A) -> H -> S   (W1 split into state/action parts)
        tw1s=w(ks[2], (M, S, H), S + A),
        tw1a=w(ks[3], (M, A, H), S + A),
        tb1=jnp.zeros((M, 1, H), f32),
        tw2=w(ks[4], (M, H, S), H),
        tb2=jnp.zeros((M, 1, S), f32),
        # barrier function h  S -> H -> 1
        hw1=w(ks[5], (S, H), S), hb1=jnp.zeros((1, H), f32),
        hw2=w(ks[6], (H, 1), H), hb2=jnp.full((1, 1), -0.1, f32),
    )


def _block_diag(blocks):
    rows = sum(b.shape[0] for b in blocks)
    cols = sum(b.shape[1] for b in blocks)
    out = jnp.zeros((rows, cols), blocks[0].dtype)
    r = c = 0
    for b in blocks:
        out = out.at[r:r + b.shape[0], c:c + b.shape[1]].set(b)
        r += b.shape[0]
        c += b.shape[1]
    return out


def pack_params(p):
    """One-time host-side packing into one weight slab + one bias slab (4 kernel inputs)."""
    def pad_lanes(x):
        return jnp.pad(x, ((0, 0), (0, LANES - x.shape[1])))

    tw1s_cat = jnp.concatenate([p["tw1s"][m] for m in range(M)], axis=1)   # [S, MH]
    tw1a_cat = jnp.concatenate([p["tw1a"][m] for m in range(M)], axis=1)   # [A, MH]
    tb1_cat = jnp.concatenate([p["tb1"][m] for m in range(M)], axis=1)     # [1, MH]

    w1cat = jnp.concatenate([p["pw1"], tw1s_cat], axis=1)                  # [S, 128]
    b1cat = jnp.concatenate([p["pb1"], tb1_cat], axis=1)                   # [1, 128]

    # tw2_m folded through the linear barrier first layer (no activation between them).
    w23 = _block_diag([p["tw2"][m] @ p["hw1"] for m in range(M)])          # [MH, MH]
    b23 = jnp.concatenate(
        [p["tb2"][m] @ p["hw1"] + p["hb1"] for m in range(M)], axis=1)     # [1, MH]

    hw2bd = _block_diag([p["hw2"]] * M)                                    # [MH, M]
    hb2rep = jnp.tile(p["hb2"], (1, M))                                    # [1, M]

    wslab = jnp.concatenate(
        [w1cat,                    # rows [0, 16)
         pad_lanes(p["pw2"]),      # rows [16, 48)
         pad_lanes(tw1a_cat),      # rows [48, 56)
         pad_lanes(w23),           # rows [56, 152)
         pad_lanes(hw2bd)],        # rows [152, 248)
        axis=0).astype(jnp.float32)
    assert wslab.shape == (WSLAB_ROWS, LANES)

    bslab = jnp.concatenate(
        [b1cat, pad_lanes(p["pb2"]), pad_lanes(b23), pad_lanes(hb2rep)],
        axis=0).astype(jnp.float32)                                        # [4, 128]
    return wslab, bslab


@jax.jit
def exploration_policy_forward(state, noise, wslab, bslab):
    """state: [1, S], noise: [NPAD, A] standard normals -> action [1, A]."""
    vmem = pl.BlockSpec(memory_space=pltpu.MemorySpace.VMEM)
    return pl.pallas_call(
        exploration_kernel,
        out_shape=jax.ShapeDtypeStruct((1, A), jnp.float32),
        in_specs=[vmem, vmem, vmem, vmem],
        out_specs=vmem,
    )(state, noise, wslab, bslab)
    # TODO(synk): the TanhNormal branch (mean/std rescale + tanh squash) and the
    # host-side numpy conversion of the original forward are not reproduced; the
    # deterministic-policy branch is implemented (noise supplied externally = randn).


if __name__ == "__main__":
    key = jax.random.PRNGKey(0)
    k_params, k_state, k_noise = jax.random.split(key, 3)

    params = make_params(k_params)
    wslab, bslab = pack_params(params)

    state = jax.random.normal(k_state, (1, S), dtype=jnp.float32)            # [1, 16]
    noise = jax.random.normal(k_noise, (NPAD, A), dtype=jnp.float32)         # [128, 8]; rows >= 100 are padding

    action = exploration_policy_forward(state, noise, wslab, bslab)
    jax.block_until_ready(action)
    assert action.shape == (1, A) and action.dtype == jnp.float32
    assert bool(jnp.all(jnp.isfinite(action)))
    print("KERNEL_OK")
</pallas_src>

<mosaic_0001>
module attributes {stable_mosaic.version = 11 : i64} {
  func.func @exploration_kernel(%arg0: memref<1x16xf32, #tpu.memory_space<vmem>>, %arg1: memref<128x8xf32, #tpu.memory_space<vmem>>, %arg2: memref<248x128xf32, #tpu.memory_space<vmem>>, %arg3: memref<4x128xf32, #tpu.memory_space<vmem>>, %arg4: memref<1x8xf32, #tpu.memory_space<vmem>>) attributes {dimension_semantics = [], scalar_prefetch = 0 : i64, scratch_operands = 0 : i64, tpu.core_type = #tpu.core_type<tc>} {
    %c0 = arith.constant 0 : index
    %c0_0 = arith.constant 0 : index
    %0 = vector.load %arg0[%c0, %c0_0] : memref<1x16xf32, #tpu.memory_space<vmem>>, vector<1x16xf32>
    %c0_1 = arith.constant 0 : index
    %c0_2 = arith.constant 0 : index
    %1 = vector.load %arg1[%c0_1, %c0_2] : memref<128x8xf32, #tpu.memory_space<vmem>>, vector<128x8xf32>
    %c0_3 = arith.constant 0 : index
    %c0_4 = arith.constant 0 : index
    %2 = vector.load %arg2[%c0_3, %c0_4] : memref<248x128xf32, #tpu.memory_space<vmem>>, vector<16x128xf32>
    %c16 = arith.constant 16 : index
    %c0_5 = arith.constant 0 : index
    %3 = vector.load %arg2[%c16, %c0_5] : memref<248x128xf32, #tpu.memory_space<vmem>>, vector<32x8xf32>
    %c48 = arith.constant 48 : index
    %c0_6 = arith.constant 0 : index
    %4 = vector.load %arg2[%c48, %c0_6] : memref<248x128xf32, #tpu.memory_space<vmem>>, vector<8x96xf32>
    %c56 = arith.constant 56 : index
    %c0_7 = arith.constant 0 : index
    %5 = vector.load %arg2[%c56, %c0_7] : memref<248x128xf32, #tpu.memory_space<vmem>>, vector<96x96xf32>
    %c152 = arith.constant 152 : index
    %c0_8 = arith.constant 0 : index
    %6 = vector.load %arg2[%c152, %c0_8] : memref<248x128xf32, #tpu.memory_space<vmem>>, vector<96x3xf32>
    %c0_9 = arith.constant 0 : index
    %c0_10 = arith.constant 0 : index
    %7 = vector.load %arg3[%c0_9, %c0_10] : memref<4x128xf32, #tpu.memory_space<vmem>>, vector<1x128xf32>
    %c1 = arith.constant 1 : index
    %c0_11 = arith.constant 0 : index
    %8 = vector.load %arg3[%c1, %c0_11] : memref<4x128xf32, #tpu.memory_space<vmem>>, vector<1x8xf32>
    %c2 = arith.constant 2 : index
    %c0_12 = arith.constant 0 : index
    %9 = vector.load %arg3[%c2, %c0_12] : memref<4x128xf32, #tpu.memory_space<vmem>>, vector<1x96xf32>
    %c3 = arith.constant 3 : index
    %c0_13 = arith.constant 0 : index
    %10 = vector.load %arg3[%c3, %c0_13] : memref<4x128xf32, #tpu.memory_space<vmem>>, vector<1x3xf32>
    %cst = arith.constant dense<0.000000e+00> : vector<1x128xf32>
    %11 = tpu.matmul %0, %2, %cst {dimension_numbers = #tpu.dot_dimension_numbers<[1], [0], [0], [1], [0, 0, 1, 1], [], []>} : vector<1x16xf32>, vector<16x128xf32>, vector<1x128xf32> -> vector<1x128xf32>
    %12 = arith.addf %11, %7 : vector<1x128xf32>
    %13 = vector.extract_strided_slice %12 {offsets = [0, 0], sizes = [1, 32], strides = [1, 1]} : vector<1x128xf32> to vector<1x32xf32>
    %cst_14 = arith.constant 0.000000e+00 : f32
    %14 = vector.broadcast %cst_14 : f32 to vector<1x32xf32>
    %15 = arith.maximumf %13, %14 : vector<1x32xf32>
    %16 = vector.extract_strided_slice %12 {offsets = [0, 32], sizes = [1, 96], strides = [1, 1]} : vector<1x128xf32> to vector<1x96xf32>
    %cst_15 = arith.constant dense<0.000000e+00> : vector<1x8xf32>
    %17 = tpu.matmul %15, %3, %cst_15 {dimension_numbers = #tpu.dot_dimension_numbers<[1], [0], [0], [1], [0, 0, 1, 1], [], []>} : vector<1x32xf32>, vector<32x8xf32>, vector<1x8xf32> -> vector<1x8xf32>
    %18 = arith.addf %17, %8 : vector<1x8xf32>
    %19 = tpu.iota {dimensions = array<i32: 0>} : vector<128x1xi32>
    %20 = arith.sitofp %19 : vector<128x1xi32> to vector<128x1xf32>
    %cst_16 = arith.constant -0.0697753057 : f32
    %21 = vector.broadcast %cst_16 : f32 to vector<128x1xf32>
    %22 = arith.mulf %21, %20 : vector<128x1xf32>
    %23 = math.exp %22 : vector<128x1xf32>
    %24 = vector.broadcast %23 : vector<128x1xf32> to vector<128x8xf32>
    %25 = arith.mulf %1, %24 : vector<128x8xf32>
    %26 = vector.broadcast %18 : vector<1x8xf32> to vector<128x8xf32>
    %27 = arith.addf %26, %25 : vector<128x8xf32>
    %cst_17 = arith.constant dense<0.000000e+00> : vector<128x96xf32>
    %28 = tpu.matmul %27, %4, %cst_17 {dimension_numbers = #tpu.dot_dimension_numbers<[1], [0], [0], [1], [0, 0, 1, 1], [], []>} : vector<128x8xf32>, vector<8x96xf32>, vector<128x96xf32> -> vector<128x96xf32>
    %29 = vector.broadcast %16 : vector<1x96xf32> to vector<128x96xf32>
    %30 = arith.addf %28, %29 : vector<128x96xf32>
    %cst_18 = arith.constant 0.000000e+00 : f32
    %31 = vector.broadcast %cst_18 : f32 to vector<128x96xf32>
    %32 = arith.maximumf %30, %31 : vector<128x96xf32>
    %cst_19 = arith.constant dense<0.000000e+00> : vector<128x96xf32>
    %33 = tpu.matmul %32, %5, %cst_19 {dimension_numbers = #tpu.dot_dimension_numbers<[1], [0], [0], [1], [0, 0, 1, 1], [], []>} : vector<128x96xf32>, vector<96x96xf32>, vector<128x96xf32> -> vector<128x96xf32>
    %34 = vector.broadcast %9 : vector<1x96xf32> to vector<128x96xf32>
    %35 = arith.addf %33, %34 : vector<128x96xf32>
    %cst_20 = arith.constant 0.000000e+00 : f32
    %36 = vector.broadcast %cst_20 : f32 to vector<128x96xf32>
    %37 = arith.maximumf %35, %36 : vector<128x96xf32>
    %cst_21 = arith.constant dense<0.000000e+00> : vector<128x3xf32>
    %38 = tpu.matmul %37, %6, %cst_21 {dimension_numbers = #tpu.dot_dimension_numbers<[1], [0], [0], [1], [0, 0, 1, 1], [], []>} : vector<128x96xf32>, vector<96x3xf32>, vector<128x3xf32> -> vector<128x3xf32>
    %39 = vector.broadcast %10 : vector<1x3xf32> to vector<128x3xf32>
    %40 = arith.addf %38, %39 : vector<128x3xf32>
    %cst_22 = arith.constant dense<0xFF800000> : vector<128xf32>
    %41 = vector.multi_reduction <maximumf>, %40, %cst_22 [1] : vector<128x3xf32> to vector<128xf32>
    %42 = vector.shape_cast %41 : vector<128xf32> to vector<128x1xf32>
    %cst_23 = arith.constant 1.000000e+02 : f32
    %43 = vector.broadcast %cst_23 : f32 to vector<128x1xf32>
    %44 = arith.cmpf olt, %20, %43 : vector<128x1xf32>
    %cst_24 = arith.constant 0.000000e+00 : f32
    %45 = vector.broadcast %cst_24 : f32 to vector<128x1xf32>
    %46 = arith.cmpf ole, %42, %45 : vector<128x1xf32>
    %47 = arith.andi %46, %44 : vector<128x1xi1>
    %cst_25 = arith.constant 1.280000e+02 : f32
    %48 = vector.broadcast %cst_25 : f32 to vector<128x1xf32>
    %49 = arith.select %47, %20, %48 : vector<128x1xi1>, vector<128x1xf32>
    %50 = vector.shape_cast %49 : vector<128x1xf32> to vector<1x128x1xf32>
    %cst_26 = arith.constant dense<0x7F800000> : vector<1xf32>
    %51 = vector.multi_reduction <minimumf>, %50, %cst_26 [1, 2] : vector<1x128x1xf32> to vector<1xf32>
    %52 = vector.shape_cast %51 : vector<1xf32> to vector<1x1x1xf32>
    %53 = vector.extract %52[0, 0, 0] : f32 from vector<1x1x1xf32>
    %cst_27 = arith.constant 1.000000e+02 : f32
    %54 = arith.cmpf olt, %53, %cst_27 : f32
    %55 = vector.broadcast %53 : f32 to vector<128x1xf32>
    %56 = arith.cmpf oeq, %20, %55 : vector<128x1xf32>
    %cst_28 = arith.constant 0.000000e+00 : f32
    %57 = vector.shape_cast %56 : vector<128x1xi1> to vector<128x1xi1>
    %58 = vector.broadcast %57 : vector<128x1xi1> to vector<128x8xi1>
    %59 = vector.broadcast %cst_28 : f32 to vector<128x8xf32>
    %60 = arith.select %58, %27, %59 : vector<128x8xi1>, vector<128x8xf32>
    %cst_29 = arith.constant dense<0.000000e+00> : vector<8xf32>
    %61 = vector.multi_reduction <add>, %60, %cst_29 [0] : vector<128x8xf32> to vector<8xf32>
    %62 = vector.shape_cast %61 : vector<8xf32> to vector<1x8xf32>
    %63 = arith.select %54, %62, %18 : vector<1x8xf32>
    %c0_30 = arith.constant 0 : index
    %c0_31 = arith.constant 0 : index
    %64 = vector.load %arg4[%c0_30, %c0_31] : memref<1x8xf32, #tpu.memory_space<vmem>>, vector<1x8xf32>
    tpu.vector_store %arg4[%c0_30, %c0_31], %63 {strides = array<i32>} : memref<1x8xf32, #tpu.memory_space<vmem>>, vector<1x8xf32>,
    return
  }
}

</mosaic_0001>

<llo_original>
// kernel: exploration_policy_forward.1
$region0: #{exploration_policy_forward.1}
  #allocation0 [shape = 'u32[]', space=smem, size = 0x4, offset = 0x4, fixed_abs, tag = 'smem constant byte address 0x4 - core index']
  #allocation1 [shape = 'u32[72,128]{1,0:T(1,128)}', space=vmem, size = 0x9000, scoped, tag = 'internal scratch']
  %s0 = inlined_call_operand.vmem [shape: f32[1,16], index: 0, kind: input, shape index: {}]
  %s1 = inlined_call_operand.vmem [shape: f32[128,8], index: 1, kind: input, shape index: {}]
  %s2 = inlined_call_operand.hbm [shape: f32[248,128], index: 2, kind: input, shape index: {}]
  %s3 = inlined_call_operand.vmem [shape: f32[4,128], index: 3, kind: input, shape index: {}]
  %s4 = inlined_call_operand.hbm [shape: f32[1,8], index: 4, kind: output, shape index: {}]
  %s5 = sld [smem:[#allocation0]]
  $region30: #{exploration_policy_forward.1} parent=0
    _
  %s7 = ssub.s32 1, %s5
  %s8 = scalar_select 0, %s7, %s5
  $region1: #{exploration_policy_forward.1} parent=0
    #allocation2 [shape = 'u8[126976]{0}', space=vmem, size = 0x1f000, scoped, tag = 'input window, operand 2, single buffered']
    #allocation3 [shape = 's32[1]{0}', space=sflag, size = 0x4, scoped, tag = 'scoped memory for exploration_policy_forward.1']
    #allocation4 [shape = 's32[1]{0}', space=sflag, size = 0x4, scoped, tag = 'scoped memory for exploration_policy_forward.1']
    #allocation5 [shape = 'u8[512]{0}', space=vmem, size = 0x400, scoped, tag = 'output window, operand 0, single buffered']
    %9 = vsyncpa [#allocation3], 0
    %10 = vsyncpa [#allocation4], 0
    // Predicated region
    $region2: #{exploration_policy_forward.1} parent=1 // pred_check
      _
    $region3: #{exploration_policy_forward.1} parent=1 // pred_check_branch
      %12 = sbr.rel (0) target = $region5
    $region4: #{exploration_policy_forward.1} parent=1 // pred_region
      _
    $region5: #{exploration_policy_forward.1} parent=1 // pred_fallthru
      _
    // Predicated region
    $region6: #{exploration_policy_forward.1} parent=1 // pred_check
      _
    $region7: #{exploration_policy_forward.1} parent=1 // pred_check_branch
      %14 = sbr.rel (0) target = $region9
    $region8: #{exploration_policy_forward.1} parent=1 // pred_region
      _
    $region9: #{exploration_policy_forward.1} parent=1 // pred_fallthru
      _
    // Predicated region
    $region10: #{exploration_policy_forward.1} parent=1 // pred_check
      _
    $region11: #{exploration_policy_forward.1} parent=1 // pred_check_branch
      %16 = sbr.rel (0) target = $region13
    $region12: #{exploration_policy_forward.1} parent=1 // pred_region
      %18 = vsyncadd [#allocation3], 0
      %s19 = sshll.u32 %s2, 4
      %s20 = int_to_ptr.hbm [resolvable:$true] %s19
      %s21 = sshll.u32 [#allocation2], 4
      %s22 = int_to_ptr.vmem [resolvable:$true] %s21
      %27 = dma.hbm_to_vmem [thread:$0]  %s20, 3968, %s22, [#allocation3], 128, 128, 8
    $region13: #{exploration_policy_forward.1} parent=1 // pred_fallthru
      _
    // Predicated region
    $region14: #{exploration_policy_forward.1} parent=1 // pred_check
      _
    $region15: #{exploration_policy_forward.1} parent=1 // pred_check_branch
      %29 = sbr.rel (0) target = $region17
    $region16: #{exploration_policy_forward.1} parent=1 // pred_region
      _
    $region17: #{exploration_policy_forward.1} parent=1 // pred_fallthru
      _
    // Predicated region
    $region18: #{exploration_policy_forward.1} parent=1 // pred_check
      _
    $region19: #{exploration_policy_forward.1} parent=1 // pred_check_branch
      %31 = sbr.rel (0) target = $region21
    $region20: #{exploration_policy_forward.1} parent=1 // pred_region
      %33 = dma.done [#allocation3], 3968
    $region21: #{exploration_policy_forward.1} parent=1 // pred_fallthru
      _
    %v34 = vld [vmem:[%s0] sm:$0x1]
    %v35 = vld [vmem:[%s1] sm:$0xff]
    %v36 = vld [vmem:[%s1 + $0x8] sm:$0xff]
    %v37 = vld [vmem:[%s1 + $0x10] sm:$0xff]
    %v38 = vld [vmem:[%s1 + $0x18] sm:$0xff]
    %v39 = vld [vmem:[%s1 + $0x20] sm:$0xff]
    %v40 = vld [vmem:[%s1 + $0x28] sm:$0xff]
    %v41 = vld [vmem:[%s1 + $0x30] sm:$0xff]
    %v42 = vld [vmem:[%s1 + $0x38] sm:$0xff]
    %v43 = vld [vmem:[%s1 + $0x40] sm:$0xff]
    %v44 = vld [vmem:[%s1 + $0x48] sm:$0xff]
    %v45 = vld [vmem:[%s1 + $0x50] sm:$0xff]
    %v46 = vld [vmem:[%s1 + $0x58] sm:$0xff]
    %v47 = vld [vmem:[%s1 + $0x60] sm:$0xff]
    %v48 = vld [vmem:[%s1 + $0x68] sm:$0xff]
    %v49 = vld [vmem:[%s1 + $0x70] sm:$0xff]
    %v50 = vld [vmem:[%s1 + $0x78] sm:$0xff]
    %v51 = vld [vmem:[#allocation2] sm:$0xff]
    %v52 = vld [vmem:[#allocation2 + $0x8] sm:$0xff]
    %v53 = vld [vmem:[#allocation2 + $0x10] sm:$0xff]
    %v54 = vld [vmem:[#allocation2 + $0x18] sm:$0xff]
    %v55 = vld [vmem:[#allocation2 + $0x20] sm:$0xff]
    %v56 = vld [vmem:[#allocation2 + $0x28] sm:$0xff]
    %v57 = vld [vmem:[#allocation2 + $0x30] sm:$0xff]
    %v58 = vld [vmem:[#allocation2 + $0x38] sm:$0xff]
    %v59 = vld [vmem:[#allocation2 + $0x40] sm:$0xff]
    %v60 = vld [vmem:[#allocation2 + $0x48] sm:$0xff]
    %v61 = vld [vmem:[#allocation2 + $0x50] sm:$0xff]
    %v62 = vld [vmem:[#allocation2 + $0x58] sm:$0xff]
    %v63 = vld [vmem:[#allocation2 + $0x60] sm:$0xff]
    %v64 = vld [vmem:[#allocation2 + $0x68] sm:$0xff]
    %v65 = vld [vmem:[#allocation2 + $0x70] sm:$0xff]
    %v66 = vld [vmem:[#allocation2 + $0x78] sm:$0xff]
    %v67 = vld [vmem:[#allocation2 + $0x80] sm:$0xff]
    %v68 = vld [vmem:[#allocation2 + $0x88] sm:$0xff]
    %v69 = vld [vmem:[#allocation2 + $0x90] sm:$0xff]
    %v70 = vld [vmem:[#allocation2 + $0x98] sm:$0xff]
    %v71 = vld [vmem:[#allocation2 + $0xa0] sm:$0xff]
    %v72 = vld [vmem:[#allocation2 + $0xa8] sm:$0xff]
    %v73 = vld [vmem:[#allocation2 + $0xb0] sm:$0xff]
    %v74 = vld [vmem:[#allocation2 + $0xb8] sm:$0xff]
    %v75 = vld [vmem:[#allocation2 + $0xc0] sm:$0xff]
    %v76 = vld [vmem:[#allocation2 + $0xc8] sm:$0xff]
    %v77 = vld [vmem:[#allocation2 + $0xd0] sm:$0xff]
    %v78 = vld [vmem:[#allocation2 + $0xd8] sm:$0xff]
    %v79 = vld [vmem:[#allocation2 + $0xe0] sm:$0xff]
    %v80 = vld [vmem:[#allocation2 + $0xe8] sm:$0xff]
    %v81 = vld [vmem:[#allocation2 + $0xf0] sm:$0xff]
    %v82 = vld [vmem:[%s3] sm:$0x1]
    %v83 = vld [vmem:[%s3 + $0x1] sm:$0x1]
    %v84 = vld [vmem:[%s3 + $0x2] sm:$0x1]
    %v85 = vld [vmem:[%s3 + $0x3] sm:$0x1]
    %vm86 = vcmask 130048
    %v88 = vsel %vm86, %v34, 0
    %90 = vmatpush.msra.mxu0 0.0
    %91 = vmatpush.msra.mxu0 0.0
    %92 = vmatpush.msra.mxu0 0.0
    %93 = vmatpush.msra.mxu0 0.0
    %94 = vmatpush.msra.mxu0 0.0
    %95 = vmatpush.msra.mxu0 0.0
    %96 = vmatpush.msra.mxu0 0.0
    %97 = vmatpush.msra.mxu0 0.0
    %98 = vmatpush.msra.mxu0 0.0
    %99 = vmatpush.msra.mxu0 0.0
    %100 = vmatpush.msra.mxu0 0.0
    %101 = vmatpush.msra.mxu0 0.0
    %102 = vmatpush.msra.mxu0 0.0
    %103 = vmatpush.msra.mxu0 0.0
    %104 = vmatpush.msra.mxu0 %v52
    %105 = vmatpush.msra.mxu0 %v51
    %106 = vmatmul.f32.gmra.mxu0 %v88
    %v107 = vpop.f32.mrf.mxu0
    %v108 = vadd.f32 %v82, %v107
    %109 = vdwg.mxu0
    %v110 = vmax.f32 %v108, 0.0
    %vm111 = vcmask 261120
    %v113 = vsel %vm111, %v110, 0
    %115 = vmatpush.msra.mxu0 0.0
    %116 = vmatpush.msra.mxu0 0.0
    %117 = vmatpush.msra.mxu0 0.0
    %118 = vmatpush.msra.mxu0 0.0
    %119 = vmatpush.msra.mxu0 0.0
    %120 = vmatpush.msra.mxu0 0.0
    %121 = vmatpush.msra.mxu0 0.0
    %122 = vmatpush.msra.mxu0 0.0
    %123 = vmatpush.msra.mxu0 0.0
    %124 = vmatpush.msra.mxu0 0.0
    %125 = vmatpush.msra.mxu0 0.0
    %126 = vmatpush.msra.mxu0 0.0
    %127 = vmatpush.msra.mxu0 %v56
    %128 = vmatpush.msra.mxu0 %v55
    %129 = vmatpush.msra.mxu0 %v54
    %130 = vmatpush.msra.mxu0 %v53
    %131 = vmatmul.f32.gmra.mxu0 %v113
    %v132 = vpop.f32.mrf.mxu0
    %v133 = vadd.f32 %v83, %v132
    %134 = vdwg.mxu0
    %v135 = vlaneseq
    %v136 = vshrl.u32 %v135, 7
    %v137 = vadd.s32 %v136, 8
    %v138 = vadd.s32 %v136, 16
    %v139 = vadd.s32 %v136, 24
    %v140 = vadd.s32 %v136, 32
    %v141 = vadd.s32 %v136, 40
    %v142 = vadd.s32 %v136, 48
    %v143 = vadd.s32 %v136, 56
    %v144 = vadd.s32 %v136, 64
    %v145 = vadd.s32 %v136, 72
    %v146 = vadd.s32 %v136, 80
    %v147 = vadd.s32 %v136, 88
    %v148 = vadd.s32 %v136, 96
    %v149 = vadd.s32 %v136, 104
    %v150 = vadd.s32 %v136, 112
    %v151 = vadd.s32 %v136, 120
    %v152 = vcvt.s32.f32 %v136
    %v153 = vcvt.s32.f32 %v137
    %v154 = vcvt.s32.f32 %v138
    %v155 = vcvt.s32.f32 %v139
    %v156 = vcvt.s32.f32 %v140
    %v157 = vcvt.s32.f32 %v141
    %v158 = vcvt.s32.f32 %v142
    %v159 = vcvt.s32.f32 %v143
    %v160 = vcvt.s32.f32 %v144
    %v161 = vcvt.s32.f32 %v145
    %v162 = vcvt.s32.f32 %v146
    %v163 = vcvt.s32.f32 %v147
    %v164 = vcvt.s32.f32 %v148
    %v165 = vcvt.s32.f32 %v149
    %v166 = vcvt.s32.f32 %v150
    %v167 = vcvt.s32.f32 %v151
    %v168 = vmul.f32 %v152, -0.069775306
    %v169 = vmul.f32 %v153, -0.069775306
    %v170 = vmul.f32 %v154, -0.069775306
    %v171 = vmul.f32 %v155, -0.069775306
    %v172 = vmul.f32 %v156, -0.069775306
    %v173 = vmul.f32 %v157, -0.069775306
    %v174 = vmul.f32 %v158, -0.069775306
    %v175 = vmul.f32 %v159, -0.069775306
    %v176 = vmul.f32 %v160, -0.069775306
    %v177 = vmul.f32 %v161, -0.069775306
    %v178 = vmul.f32 %v162, -0.069775306
    %v179 = vmul.f32 %v163, -0.069775306
    %v180 = vmul.f32 %v164, -0.069775306
    %v181 = vmul.f32 %v165, -0.069775306
    %v182 = vmul.f32 %v166, -0.069775306
    %v183 = vmul.f32 %v167, -0.069775306
    %v184 = vmul.f32 %v168, 1.442695
    %v185 = vpow.pop %v184
    %v186 = vmul.f32 %v169, 1.442695
    %v187 = vpow.pop %v186
    %v188 = vmul.f32 %v170, 1.442695
    %v189 = vpow.pop %v188
    %v190 = vmul.f32 %v171, 1.442695
    %v191 = vpow.pop %v190
    %v192 = vmul.f32 %v172, 1.442695
    %v193 = vpow.pop %v192
    %v194 = vmul.f32 %v173, 1.442695
    %v195 = vpow.pop %v194
    %v196 = vmul.f32 %v174, 1.442695
    %v197 = vpow.pop %v196
    %v198 = vmul.f32 %v175, 1.442695
    %v199 = vpow.pop %v198
    %v200 = vmul.f32 %v176, 1.442695
    %v201 = vpow.pop %v200
    %v202 = vmul.f32 %v177, 1.442695
    %v203 = vpow.pop %v202
    %v204 = vmul.f32 %v178, 1.442695
    %v205 = vpow.pop %v204
    %v206 = vmul.f32 %v179, 1.442695
    %v207 = vpow.pop %v206
    %v208 = vmul.f32 %v180, 1.442695
    %v209 = vpow.pop %v208
    %v210 = vmul.f32 %v181, 1.442695
    %v211 = vpow.pop %v210
    %v212 = vmul.f32 %v182, 1.442695
    %v213 = vpow.pop %v212
    %v214 = vmul.f32 %v183, 1.442695
    %v215 = vpow.pop %v214
    %v216 = vmul.f32 %v35, %v185
    %v217 = vmul.f32 %v36, %v187
    %v218 = vmul.f32 %v37, %v189
    %v219 = vmul.f32 %v38, %v191
    %v220 = vmul.f32 %v39, %v193
    %v221 = vmul.f32 %v40, %v195
    %v222 = vmul.f32 %v41, %v197
    %v223 = vmul.f32 %v42, %v199
    %v224 = vmul.f32 %v43, %v201
    %v225 = vmul.f32 %v44, %v203
    %v226 = vmul.f32 %v45, %v205
    %v227 = vmul.f32 %v46, %v207
    %v228 = vmul.f32 %v47, %v209
    %v229 = vmul.f32 %v48, %v211
    %v230 = vmul.f32 %v49, %v213
    %v231 = vmul.f32 %v50, %v215
    %v232 = vperm.slane %v133, 0
    %v233 = vadd.f32 %v232, %v216
    %v234 = vadd.f32 %v232, %v217
    %v235 = vadd.f32 %v232, %v218
    %v236 = vadd.f32 %v232, %v219
    %v237 = vadd.f32 %v232, %v220
    %v238 = vadd.f32 %v232, %v221
    %v239 = vadd.f32 %v232, %v222
    %v240 = vadd.f32 %v232, %v223
    %v241 = vadd.f32 %v232, %v224
    %v242 = vadd.f32 %v232, %v225
    %v243 = vadd.f32 %v232, %v226
    %v244 = vadd.f32 %v232, %v227
    %v245 = vadd.f32 %v232, %v228
    %v246 = vadd.f32 %v232, %v229
    %v247 = vadd.f32 %v232, %v230
    %v248 = vadd.f32 %v232, %v231
    %v249 = vperm.slane %v108, 0
    %251 = vrot.lane.b32.xlu0 %v249, 96
    %v252 = vpop.permute.xlu0 %251
    %vm254 = vcmask 64512
    %v256 = vsel %vm254, %v233, 0
    %v259 = vsel %vm254, %v234, 0
    %v262 = vsel %vm254, %v235, 0
    %v265 = vsel %vm254, %v236, 0
    %v268 = vsel %vm254, %v237, 0
    %v271 = vsel %vm254, %v238, 0
    %v274 = vsel %vm254, %v239, 0
    %v277 = vsel %vm254, %v240, 0
    %v280 = vsel %vm254, %v241, 0
    %v283 = vsel %vm254, %v242, 0
    %v286 = vsel %vm254, %v243, 0
    %v289 = vsel %vm254, %v244, 0
    %v292 = vsel %vm254, %v245, 0
    %v295 = vsel %vm254, %v246, 0
    %v298 = vsel %vm254, %v247, 0
    %v301 = vsel %vm254, %v248, 0
    %303 = vmatpush.msra.mxu0 0.0
    %304 = vmatpush.msra.mxu0 0.0
    %305 = vmatpush.msra.mxu0 0.0
    %306 = vmatpush.msra.mxu0 0.0
    %307 = vmatpush.msra.mxu0 0.0
    %308 = vmatpush.msra.mxu0 0.0
    %309 = vmatpush.msra.mxu0 0.0
    %310 = vmatpush.msra.mxu0 0.0
    %311 = vmatpush.msra.mxu0 0.0
    %312 = vmatpush.msra.mxu0 0.0
    %313 = vmatpush.msra.mxu0 0.0
    %314 = vmatpush.msra.mxu0 0.0
    %315 = vmatpush.msra.mxu0 0.0
    %316 = vmatpush.msra.mxu0 0.0
    %317 = vmatpush.msra.mxu0 0.0
    %318 = vmatpush.msra.mxu0 %v57
    %319 = vmatmul.f32.gmra.mxu0 %v256
    %v320 = vpop.f32.mrf.mxu0
    %v321 = vadd.f32 %v252, %v320
    %322 = vmatmul.f32.gmra.mxu0 %v259
    %v323 = vpop.f32.mrf.mxu0
    %v324 = vadd.f32 %v252, %v323
    %325 = vmatmul.f32.gmra.mxu0 %v262
    %v326 = vpop.f32.mrf.mxu0
    %v327 = vadd.f32 %v252, %v326
    %328 = vmatmul.f32.gmra.mxu0 %v265
    %v329 = vpop.f32.mrf.mxu0
    %v330 = vadd.f32 %v252, %v329
    %331 = vmatmul.f32.gmra.mxu0 %v268
    %v332 = vpop.f32.mrf.mxu0
    %v333 = vadd.f32 %v252, %v332
    %334 = vmatmul.f32.gmra.mxu0 %v271
    %v335 = vpop.f32.mrf.mxu0
    %v336 = vadd.f32 %v252, %v335
    %337 = vmatmul.f32.gmra.mxu0 %v274
    %v338 = vpop.f32.mrf.mxu0
    %v339 = vadd.f32 %v252, %v338
    %340 = vmatmul.f32.gmra.mxu0 %v277
    %v341 = vpop.f32.mrf.mxu0
    %v342 = vadd.f32 %v252, %v341
    %343 = vmatmul.f32.gmra.mxu0 %v280
    %v344 = vpop.f32.mrf.mxu0
    %v345 = vadd.f32 %v252, %v344
    %346 = vmatmul.f32.gmra.mxu0 %v283
    %v347 = vpop.f32.mrf.mxu0
    %v348 = vadd.f32 %v252, %v347
    %349 = vmatmul.f32.gmra.mxu0 %v286
    %v350 = vpop.f32.mrf.mxu0
    %v351 = vadd.f32 %v252, %v350
    %352 = vmatmul.f32.gmra.mxu0 %v289
    %v353 = vpop.f32.mrf.mxu0
    %v354 = vadd.f32 %v252, %v353
    %355 = vmatmul.f32.gmra.mxu0 %v292
    %v356 = vpop.f32.mrf.mxu0
    %v357 = vadd.f32 %v252, %v356
    %358 = vmatmul.f32.gmra.mxu0 %v295
    %v359 = vpop.f32.mrf.mxu0
    %v360 = vadd.f32 %v252, %v359
    %361 = vmatmul.f32.gmra.mxu0 %v298
    %v362 = vpop.f32.mrf.mxu0
    %v363 = vadd.f32 %v252, %v362
    %364 = vmatmul.f32.gmra.mxu0 %v301
    %v365 = vpop.f32.mrf.mxu0
    %v366 = vadd.f32 %v252, %v365
    %367 = vdwg.mxu0
    %v368 = vmax.f32 %v321, 0.0
    %v369 = vmax.f32 %v324, 0.0
    %v370 = vmax.f32 %v327, 0.0
    %v371 = vmax.f32 %v330, 0.0
    %v372 = vmax.f32 %v333, 0.0
    %v373 = vmax.f32 %v336, 0.0
    %v374 = vmax.f32 %v339, 0.0
    %v375 = vmax.f32 %v342, 0.0
    %v376 = vmax.f32 %v345, 0.0
    %v377 = vmax.f32 %v348, 0.0
    %v378 = vmax.f32 %v351, 0.0
    %v379 = vmax.f32 %v354, 0.0
    %v380 = vmax.f32 %v357, 0.0
    %v381 = vmax.f32 %v360, 0.0
    %v382 = vmax.f32 %v363, 0.0
    %v383 = vmax.f32 %v366, 0.0
    %v384 = vperm.slane %v84, 0
    %vm385 = vcmask 785408
    %v387 = vsel %vm385, %v368, 0
    %v390 = vsel %vm385, %v369, 0
    %v393 = vsel %vm385, %v370, 0
    %v396 = vsel %vm385, %v371, 0
    %v399 = vsel %vm385, %v372, 0
    %v402 = vsel %vm385, %v373, 0
    %v405 = vsel %vm385, %v374, 0
    %v408 = vsel %vm385, %v375, 0
    %v411 = vsel %vm385, %v376, 0
    %v414 = vsel %vm385, %v377, 0
    %v417 = vsel %vm385, %v378, 0
    %v420 = vsel %vm385, %v379, 0
    %v423 = vsel %vm385, %v380, 0
    %v426 = vsel %vm385, %v381, 0
    %v429 = vsel %vm385, %v382, 0
    %v432 = vsel %vm385, %v383, 0
    %434 = vmatpush.msra.mxu0 0.0
    %435 = vmatpush.msra.mxu0 0.0
    %436 = vmatpush.msra.mxu0 0.0
    %437 = vmatpush.msra.mxu0 0.0
    %438 = vmatpush.msra.mxu0 %v69
    %439 = vmatpush.msra.mxu0 %v68
    %440 = vmatpush.msra.mxu0 %v67
    %441 = vmatpush.msra.mxu0 %v66
    %442 = vmatpush.msra.mxu0 %v65
    %443 = vmatpush.msra.mxu0 %v64
    %444 = vmatpush.msra.mxu0 %v63
    %445 = vmatpush.msra.mxu0 %v62
    %446 = vmatpush.msra.mxu0 %v61
    %447 = vmatpush.msra.mxu0 %v60
    %448 = vmatpush.msra.mxu0 %v59
    %449 = vmatpush.msra.mxu0 %v58
    %450 = vmatmul.f32.gmra.mxu0 %v387
    %v451 = vpop.f32.mrf.mxu0
    %v452 = vadd.f32 %v384, %v451
    %453 = vmatmul.f32.gmra.mxu0 %v390
    %v454 = vpop.f32.mrf.mxu0
    %v455 = vadd.f32 %v384, %v454
    %456 = vmatmul.f32.gmra.mxu0 %v393
    %v457 = vpop.f32.mrf.mxu0
    %v458 = vadd.f32 %v384, %v457
    %459 = vmatmul.f32.gmra.mxu0 %v396
    %v460 = vpop.f32.mrf.mxu0
    %v461 = vadd.f32 %v384, %v460
    %462 = vmatmul.f32.gmra.mxu0 %v399
    %v463 = vpop.f32.mrf.mxu0
    %v464 = vadd.f32 %v384, %v463
    %465 = vmatmul.f32.gmra.mxu0 %v402
    %v466 = vpop.f32.mrf.mxu0
    %v467 = vadd.f32 %v384, %v466
    %468 = vmatmul.f32.gmra.mxu0 %v405
    %v469 = vpop.f32.mrf.mxu0
    %v470 = vadd.f32 %v384, %v469
    %471 = vmatmul.f32.gmra.mxu0 %v408
    %v472 = vpop.f32.mrf.mxu0
    %v473 = vadd.f32 %v384, %v472
    %474 = vmatmul.f32.gmra.mxu0 %v411
    %v475 = vpop.f32.mrf.mxu0
    %v476 = vadd.f32 %v384, %v475
    %477 = vmatmul.f32.gmra.mxu0 %v414
    %v478 = vpop.f32.mrf.mxu0
    %v479 = vadd.f32 %v384, %v478
    %480 = vmatmul.f32.gmra.mxu0 %v417
    %v481 = vpop.f32.mrf.mxu0
    %v482 = vadd.f32 %v384, %v481
    %483 = vmatmul.f32.gmra.mxu0 %v420
    %v484 = vpop.f32.mrf.mxu0
    %v485 = vadd.f32 %v384, %v484
    %486 = vmatmul.f32.gmra.mxu0 %v423
    %v487 = vpop.f32.mrf.mxu0
    %v488 = vadd.f32 %v384, %v487
    %489 = vmatmul.f32.gmra.mxu0 %v426
    %v490 = vpop.f32.mrf.mxu0
    %v491 = vadd.f32 %v384, %v490
    %492 = vmatmul.f32.gmra.mxu0 %v429
    %v493 = vpop.f32.mrf.mxu0
    %v494 = vadd.f32 %v384, %v493
    %495 = vmatmul.f32.gmra.mxu0 %v432
    %v496 = vpop.f32.mrf.mxu0
    %v497 = vadd.f32 %v384, %v496
    %498 = vdwg.mxu0
    %v499 = vmax.f32 %v452, 0.0
    %v500 = vmax.f32 %v455, 0.0
    %v501 = vmax.f32 %v458, 0.0
    %v502 = vmax.f32 %v461, 0.0
    %v503 = vmax.f32 %v464, 0.0
    %v504 = vmax.f32 %v467, 0.0
    %v505 = vmax.f32 %v470, 0.0
    %v506 = vmax.f32 %v473, 0.0
    %v507 = vmax.f32 %v476, 0.0
    %v508 = vmax.f32 %v479, 0.0
    %v509 = vmax.f32 %v482, 0.0
    %v510 = vmax.f32 %v485, 0.0
    %v511 = vmax.f32 %v488, 0.0
    %v512 = vmax.f32 %v491, 0.0
    %v513 = vmax.f32 %v494, 0.0
    %v514 = vmax.f32 %v497, 0.0
    %v515 = vperm.slane %v85, 0
    %v517 = vsel %vm385, %v499, 0
    %v520 = vsel %vm385, %v500, 0
    %v523 = vsel %vm385, %v501, 0
    %v526 = vsel %vm385, %v502, 0
    %v529 = vsel %vm385, %v503, 0
    %v532 = vsel %vm385, %v504, 0
    %v535 = vsel %vm385, %v505, 0
    %v538 = vsel %vm385, %v506, 0
    %v541 = vsel %vm385, %v507, 0
    %v544 = vsel %vm385, %v508, 0
    %v547 = vsel %vm385, %v509, 0
    %v550 = vsel %vm385, %v510, 0
    %v553 = vsel %vm385, %v511, 0
    %v556 = vsel %vm385, %v512, 0
    %v559 = vsel %vm385, %v513, 0
    %v562 = vsel %vm385, %v514, 0
    %564 = vmatpush.msra.mxu0 0.0
    %565 = vmatpush.msra.mxu0 0.0
    %566 = vmatpush.msra.mxu0 0.0
    %567 = vmatpush.msra.mxu0 0.0
    %568 = vmatpush.msra.mxu0 %v81
    %569 = vmatpush.msra.mxu0 %v80
    %570 = vmatpush.msra.mxu0 %v79
    %571 = vmatpush.msra.mxu0 %v78
    %572 = vmatpush.msra.mxu0 %v77
    %573 = vmatpush.msra.mxu0 %v76
    %574 = vmatpush.msra.mxu0 %v75
    %575 = vmatpush.msra.mxu0 %v74
    %576 = vmatpush.msra.mxu0 %v73
    %577 = vmatpush.msra.mxu0 %v72
    %578 = vmatpush.msra.mxu0 %v71
    %579 = vmatpush.msra.mxu0 %v70
    %580 = vmatmul.f32.gmra.mxu0 %v517
    %v581 = vpop.f32.mrf.mxu0
    %v582 = vadd.f32 %v515, %v581
    %583 = vmatmul.f32.gmra.mxu0 %v520
    %v584 = vpop.f32.mrf.mxu0
    %v585 = vadd.f32 %v515, %v584
    %586 = vmatmul.f32.gmra.mxu0 %v523
    %v587 = vpop.f32.mrf.mxu0
    %v588 = vadd.f32 %v515, %v587
    %589 = vmatmul.f32.gmra.mxu0 %v526
    %v590 = vpop.f32.mrf.mxu0
    %v591 = vadd.f32 %v515, %v590
    %592 = vmatmul.f32.gmra.mxu0 %v529
    %v593 = vpop.f32.mrf.mxu0
    %v594 = vadd.f32 %v515, %v593
    %595 = vmatmul.f32.gmra.mxu0 %v532
    %v596 = vpop.f32.mrf.mxu0
    %v597 = vadd.f32 %v515, %v596
    %598 = vmatmul.f32.gmra.mxu0 %v535
    %v599 = vpop.f32.mrf.mxu0
    %v600 = vadd.f32 %v515, %v599
    %601 = vmatmul.f32.gmra.mxu0 %v538
    %v602 = vpop.f32.mrf.mxu0
    %v603 = vadd.f32 %v515, %v602
    %604 = vmatmul.f32.gmra.mxu0 %v541
    %v605 = vpop.f32.mrf.mxu0
    %v606 = vadd.f32 %v515, %v605
    %607 = vmatmul.f32.gmra.mxu0 %v544
    %v608 = vpop.f32.mrf.mxu0
    %v609 = vadd.f32 %v515, %v608
    %610 = vmatmul.f32.gmra.mxu0 %v547
    %v611 = vpop.f32.mrf.mxu0
    %v612 = vadd.f32 %v515, %v611
    %613 = vmatmul.f32.gmra.mxu0 %v550
    %v614 = vpop.f32.mrf.mxu0
    %v615 = vadd.f32 %v515, %v614
    %616 = vmatmul.f32.gmra.mxu0 %v553
    %v617 = vpop.f32.mrf.mxu0
    %v618 = vadd.f32 %v515, %v617
    %619 = vmatmul.f32.gmra.mxu0 %v556
    %v620 = vpop.f32.mrf.mxu0
    %v621 = vadd.f32 %v515, %v620
    %622 = vmatmul.f32.gmra.mxu0 %v559
    %v623 = vpop.f32.mrf.mxu0
    %v624 = vadd.f32 %v515, %v623
    %625 = vmatmul.f32.gmra.mxu0 %v562
    %v626 = vpop.f32.mrf.mxu0
    %v627 = vadd.f32 %v515, %v626
    %628 = vdwg.mxu0
    %vm629 = vcmask 23552
    %v630 = vsel %vm629, %v582, -inf
    %631 = vmax.xlane.f32.xlu0 %v630
    %v632 = vpop.xlane.xlu0 %631
    %v633 = vsel %vm629, %v585, -inf
    %634 = vmax.xlane.f32.xlu0 %v633
    %v635 = vpop.xlane.xlu0 %634
    %v636 = vsel %vm629, %v588, -inf
    %637 = vmax.xlane.f32.xlu0 %v636
    %v638 = vpop.xlane.xlu0 %637
    %v639 = vsel %vm629, %v591, -inf
    %640 = vmax.xlane.f32.xlu0 %v639
    %v641 = vpop.xlane.xlu0 %640
    %v642 = vsel %vm629, %v594, -inf
    %643 = vmax.xlane.f32.xlu0 %v642
    %v644 = vpop.xlane.xlu0 %643
    %v645 = vsel %vm629, %v597, -inf
    %646 = vmax.xlane.f32.xlu0 %v645
    %v647 = vpop.xlane.xlu0 %646
    %v648 = vsel %vm629, %v600, -inf
    %649 = vmax.xlane.f32.xlu0 %v648
    %v650 = vpop.xlane.xlu0 %649
    %v651 = vsel %vm629, %v603, -inf
    %652 = vmax.xlane.f32.xlu0 %v651
    %v653 = vpop.xlane.xlu0 %652
    %v654 = vsel %vm629, %v606, -inf
    %655 = vmax.xlane.f32.xlu0 %v654
    %v656 = vpop.xlane.xlu0 %655
    %v657 = vsel %vm629, %v609, -inf
    %658 = vmax.xlane.f32.xlu0 %v657
    %v659 = vpop.xlane.xlu0 %658
    %v660 = vsel %vm629, %v612, -inf
    %661 = vmax.xlane.f32.xlu0 %v660
    %v662 = vpop.xlane.xlu0 %661
    %v663 = vsel %vm629, %v615, -inf
    %664 = vmax.xlane.f32.xlu0 %v663
    %v665 = vpop.xlane.xlu0 %664
    %v666 = vsel %vm629, %v618, -inf
    %667 = vmax.xlane.f32.xlu0 %v666
    %v668 = vpop.xlane.xlu0 %667
    %v669 = vsel %vm629, %v621, -inf
    %670 = vmax.xlane.f32.xlu0 %v669
    %v671 = vpop.xlane.xlu0 %670
    %v672 = vsel %vm629, %v624, -inf
    %673 = vmax.xlane.f32.xlu0 %v672
    %v674 = vpop.xlane.xlu0 %673
    %v675 = vsel %vm629, %v627, -inf
    %676 = vmax.xlane.f32.xlu0 %v675
    %v677 = vpop.xlane.xlu0 %676
    %vm678 = vcmp.lt.f32.partialorder %v152, 100.0
    %vm679 = vcmp.lt.f32.partialorder %v153, 100.0
    %vm680 = vcmp.lt.f32.partialorder %v154, 100.0
    %vm681 = vcmp.lt.f32.partialorder %v155, 100.0
    %vm682 = vcmp.lt.f32.partialorder %v156, 100.0
    %vm683 = vcmp.lt.f32.partialorder %v157, 100.0
    %vm684 = vcmp.lt.f32.partialorder %v158, 100.0
    %vm685 = vcmp.lt.f32.partialorder %v159, 100.0
    %vm686 = vcmp.lt.f32.partialorder %v160, 100.0
    %vm687 = vcmp.lt.f32.partialorder %v161, 100.0
    %vm688 = vcmp.lt.f32.partialorder %v162, 100.0
    %vm689 = vcmp.lt.f32.partialorder %v163, 100.0
    %vm690 = vcmp.lt.f32.partialorder %v164, 100.0
    %vm691 = vcmp.lt.f32.partialorder %v165, 100.0
    %vm692 = vcmp.lt.f32.partialorder %v166, 100.0
    %vm693 = vcmp.lt.f32.partialorder %v167, 100.0
    %vm694 = vcmp.le.f32.partialorder %v632, 0.0
    %vm695 = vcmp.le.f32.partialorder %v635, 0.0
    %vm696 = vcmp.le.f32.partialorder %v638, 0.0
    %vm697 = vcmp.le.f32.partialorder %v641, 0.0
    %vm698 = vcmp.le.f32.partialorder %v644, 0.0
    %vm699 = vcmp.le.f32.partialorder %v647, 0.0
    %vm700 = vcmp.le.f32.partialorder %v650, 0.0
    %vm701 = vcmp.le.f32.partialorder %v653, 0.0
    %vm702 = vcmp.le.f32.partialorder %v656, 0.0
    %vm703 = vcmp.le.f32.partialorder %v659, 0.0
    %vm704 = vcmp.le.f32.partialorder %v662, 0.0
    %vm705 = vcmp.le.f32.partialorder %v665, 0.0
    %vm706 = vcmp.le.f32.partialorder %v668, 0.0
    %vm707 = vcmp.le.f32.partialorder %v671, 0.0
    %vm708 = vcmp.le.f32.partialorder %v674, 0.0
    %vm709 = vcmp.le.f32.partialorder %v677, 0.0
    %vm710 = vmand %vm694, %vm678
    %vm711 = vmand %vm695, %vm679
    %vm712 = vmand %vm696, %vm680
    %vm713 = vmand %vm697, %vm681
    %vm714 = vmand %vm698, %vm682
    %vm715 = vmand %vm699, %vm683
    %vm716 = vmand %vm700, %vm684
    %vm717 = vmand %vm701, %vm685
    %vm718 = vmand %vm702, %vm686
    %vm719 = vmand %vm703, %vm687
    %vm720 = vmand %vm704, %vm688
    %vm721 = vmand %vm705, %vm689
    %vm722 = vmand %vm706, %vm690
    %vm723 = vmand %vm707, %vm691
    %vm724 = vmand %vm708, %vm692
    %vm725 = vmand %vm709, %vm693
    %v726 = vsel %vm710, %v152, 128.0
    %v727 = vsel %vm711, %v153, 128.0
    %v728 = vsel %vm712, %v154, 128.0
    %v729 = vsel %vm713, %v155, 128.0
    %v730 = vsel %vm714, %v156, 128.0
    %v731 = vsel %vm715, %v157, 128.0
    %v732 = vsel %vm716, %v158, 128.0
    %v733 = vsel %vm717, %v159, 128.0
    %v734 = vsel %vm718, %v160, 128.0
    %v735 = vsel %vm719, %v161, 128.0
    %v736 = vsel %vm720, %v162, 128.0
    %v737 = vsel %vm721, %v163, 128.0
    %v738 = vsel %vm722, %v164, 128.0
    %v739 = vsel %vm723, %v165, 128.0
    %v740 = vsel %vm724, %v166, 128.0
    %v741 = vsel %vm725, %v167, 128.0
    %v742 = vmin.f32 %v726, %v730
    %v743 = vmin.f32 %v727, %v731
    %v744 = vmin.f32 %v728, %v732
    %v745 = vmin.f32 %v729, %v733
    %v746 = vmin.f32 %v742, %v734
    %v747 = vmin.f32 %v743, %v735
    %v748 = vmin.f32 %v744, %v736
    %v749 = vmin.f32 %v745, %v737
    %v750 = vmin.f32 %v746, %v738
    %v751 = vmin.f32 %v747, %v739
    %v752 = vmin.f32 %v748, %v740
    %v753 = vmin.f32 %v749, %v741
    %v754 = vmin.f32 %v750, %v751
    %v755 = vmin.f32 %v752, %v753
    %v756 = vmin.f32 %v754, %v755
    %v757 = vrot.slane %v756, 4
    %v758 = vmin.f32 %v756, %v757
    %v759 = vrot.slane %v758, 2
    %v760 = vmin.f32 %v758, %v759
    %v761 = vrot.slane %v760, 1
    %v762 = vmin.f32 %v760, %v761
    %s763 = vtos %v762
    %p764 = scmp.lt.f32.partialorder %s763, 100.0
    %v765 = vstv %s763
    %vm766 = vcmp.eq.f32.partialorder %v152, %v765
    %vm767 = vcmp.eq.f32.partialorder %v153, %v765
    %vm768 = vcmp.eq.f32.partialorder %v154, %v765
    %vm769 = vcmp.eq.f32.partialorder %v155, %v765
    %vm770 = vcmp.eq.f32.partialorder %v156, %v765
    %vm771 = vcmp.eq.f32.partialorder %v157, %v765
    %vm772 = vcmp.eq.f32.partialorder %v158, %v765
    %vm773 = vcmp.eq.f32.partialorder %v159, %v765
    %vm774 = vcmp.eq.f32.partialorder %v160, %v765
    %vm775 = vcmp.eq.f32.partialorder %v161, %v765
    %vm776 = vcmp.eq.f32.partialorder %v162, %v765
    %vm777 = vcmp.eq.f32.partialorder %v163, %v765
    %vm778 = vcmp.eq.f32.partialorder %v164, %v765
    %vm779 = vcmp.eq.f32.partialorder %v165, %v765
    %vm780 = vcmp.eq.f32.partialorder %v166, %v765
    %vm781 = vcmp.eq.f32.partialorder %v167, %v765
    %v782 = vsel %vm766, 1, 0
    %v783 = vsel %vm767, 1, 0
    %v784 = vsel %vm768, 1, 0
    %v785 = vsel %vm769, 1, 0
    %v786 = vsel %vm770, 1, 0
    %v787 = vsel %vm771, 1, 0
    %v788 = vsel %vm772, 1, 0
    %v789 = vsel %vm773, 1, 0
    %v790 = vsel %vm774, 1, 0
    %v791 = vsel %vm775, 1, 0
    %v792 = vsel %vm776, 1, 0
    %v793 = vsel %vm777, 1, 0
    %v794 = vsel %vm778, 1, 0
    %v795 = vsel %vm779, 1, 0
    %v796 = vsel %vm780, 1, 0
    %v797 = vsel %vm781, 1, 0
    %vm798 = vcmp.eq.s32.totalorder %v782, 1
    %vm799 = vcmp.eq.s32.totalorder %v783, 1
    %vm800 = vcmp.eq.s32.totalorder %v784, 1
    %vm801 = vcmp.eq.s32.totalorder %v785, 1
    %vm802 = vcmp.eq.s32.totalorder %v786, 1
    %vm803 = vcmp.eq.s32.totalorder %v787, 1
    %vm804 = vcmp.eq.s32.totalorder %v788, 1
    %vm805 = vcmp.eq.s32.totalorder %v789, 1
    %vm806 = vcmp.eq.s32.totalorder %v790, 1
    %vm807 = vcmp.eq.s32.totalorder %v791, 1
    %vm808 = vcmp.eq.s32.totalorder %v792, 1
    %vm809 = vcmp.eq.s32.totalorder %v793, 1
    %vm810 = vcmp.eq.s32.totalorder %v794, 1
    %vm811 = vcmp.eq.s32.totalorder %v795, 1
    %vm812 = vcmp.eq.s32.totalorder %v796, 1
    %vm813 = vcmp.eq.s32.totalorder %v797, 1
    %v814 = vsel %vm798, %v233, 0.0
    %v815 = vsel %vm799, %v234, 0.0
    %v816 = vsel %vm800, %v235, 0.0
    %v817 = vsel %vm801, %v236, 0.0
    %v818 = vsel %vm802, %v237, 0.0
    %v819 = vsel %vm803, %v238, 0.0
    %v820 = vsel %vm804, %v239, 0.0
    %v821 = vsel %vm805, %v240, 0.0
    %v822 = vsel %vm806, %v241, 0.0
    %v823 = vsel %vm807, %v242, 0.0
    %v824 = vsel %vm808, %v243, 0.0
    %v825 = vsel %vm809, %v244, 0.0
    %v826 = vsel %vm810, %v245, 0.0
    %v827 = vsel %vm811, %v246, 0.0
    %v828 = vsel %vm812, %v247, 0.0
    %v829 = vsel %vm813, %v248, 0.0
    %v830 = vsel %vm254, %v814, 0.0
    %v831 = vsel %vm254, %v815, 0.0
    %v832 = vadd.f32 %v830, %v831
    %v833 = vsel %vm254, %v816, 0.0
    %v834 = vadd.f32 %v832, %v833
    %v835 = vsel %vm254, %v817, 0.0
    %v836 = vadd.f32 %v834, %v835
    %v837 = vsel %vm254, %v818, 0.0
    %v838 = vadd.f32 %v836, %v837
    %v839 = vsel %vm254, %v819, 0.0
    %v840 = vadd.f32 %v838, %v839
    %v841 = vsel %vm254, %v820, 0.0
    %v842 = vadd.f32 %v840, %v841
    %v843 = vsel %vm254, %v821, 0.0
    %v844 = vadd.f32 %v842, %v843
    %v845 = vsel %vm254, %v822, 0.0
    %v846 = vadd.f32 %v844, %v845
    %v847 = vsel %vm254, %v823, 0.0
    %v848 = vadd.f32 %v846, %v847
    %v849 = vsel %vm254, %v824, 0.0
    %v850 = vadd.f32 %v848, %v849
    %v851 = vsel %vm254, %v825, 0.0
    %v852 = vadd.f32 %v850, %v851
    %v853 = vsel %vm254, %v826, 0.0
    %v854 = vadd.f32 %v852, %v853
    %v855 = vsel %vm254, %v827, 0.0
    %v856 = vadd.f32 %v854, %v855
    %v857 = vsel %vm254, %v828, 0.0
    %v858 = vadd.f32 %v856, %v857
    %v859 = vsel %vm254, %v829, 0.0
    %v860 = vadd.f32 %v858, %v859
    %v861 = vrot.slane %v860, 4
    %v862 = vadd.f32 %v860, %v861
    %v863 = vrot.slane %v862, 2
    %v864 = vadd.f32 %v862, %v863
    %v865 = vrot.slane %v864, 1
    %v866 = vadd.f32 %v864, %v865
    %s867 = scalar_select %p764, 1, 0
    %v868 = vstv %s867
    %vm869 = vcmp.eq.s32.totalorder %v868, 1
    %v870 = vsel %vm869, %v866, %v133
    %vm871 = vcmask 57344
    %872 = vst.msk [vmem:[#allocation5] sm:$0x1] %vm871, %v870
    // Predicated region
    $region22: #{exploration_policy_forward.1} parent=1 // pred_check
      _
    $region23: #{exploration_policy_forward.1} parent=1 // pred_check_branch
      %874 = sbr.rel (0) target = $region25
    $region24: #{exploration_policy_forward.1} parent=1 // pred_region
      %876 = vsyncadd [#allocation4], 0
      %s878 = sshll.u32 [#allocation5], 4
      %s879 = int_to_ptr.vmem [resolvable:$true] %s878
      %s880 = sshll.u32 %s4, 4
      %s881 = int_to_ptr.hbm [resolvable:$true] %s880
      %883 = dma.vmem_to_hbm [thread:$0]  %s879, 16, %s881, [#allocation4]
    $region25: #{exploration_policy_forward.1} parent=1 // pred_fallthru
      _
    // Predicated region
    $region26: #{exploration_policy_forward.1} parent=1 // pred_check
      _
    $region27: #{exploration_policy_forward.1} parent=1 // pred_check_branch
      %885 = sbr.rel (0) target = $region29
    $region28: #{exploration_policy_forward.1} parent=1 // pred_region
      %887 = dma.done [#allocation4], 16
    $region29: #{exploration_policy_forward.1} parent=1 // pred_fallthru
      _
    %888 = vsyncpa [#allocation3], 1
    %889 = vsyncpa [#allocation4], 1

</llo_original>
